<compile_context>
chip_gen: v7x
topology: tpu7x:2x2x1
jax: 0.10.0
libtpu: 0.0.40
codegen_flags: <defaults>
</compile_context>

<pallas_src>
import functools

import jax
import jax.numpy as jnp
from jax import lax
from jax.experimental import pallas as pl
from jax.experimental.pallas import tpu as pltpu


def gating_kernel(x_ref, w1t_ref, b1_ref, w2_ref, b2_ref, o_ref, *, chunk):
    # x_ref  : (IN, TB)   batch tile, batch on lanes
    # w1t_ref: (HID, IN)  resident weights (W1 transposed)
    # b1_ref : (HID, 1)
    # w2_ref : (1, HID)
    # b2_ref : (1, 1)     SMEM scalar
    # o_ref  : (1, TB)    lane-dense output tile
    hid = w1t_ref.shape[0]

    # Hoist resident-operand loads / broadcasts above the chunk loop (JAX does
    # not CSE broadcast_in_dim; re-emitting them per chunk wastes VALU slots).
    w1t = w1t_ref[...]                                             # (HID, IN)
    w2 = w2_ref[...].astype(jnp.float32)                           # (1, HID)
    b1 = jnp.broadcast_to(b1_ref[...].astype(jnp.float32), (hid, chunk))
    b2 = b2_ref[0, 0]

    n_chunks = x_ref.shape[1] // chunk                             # static

    def body(c, carry):
        off = pl.multiple_of(c * chunk, chunk)
        xc = x_ref[:, pl.ds(off, chunk)]                           # (IN, chunk)
        # Layer 1 on the MXU, f32 accumulation; h stays in vregs per chunk.
        h = jnp.dot(w1t, xc, preferred_element_type=jnp.float32)   # (HID, chunk)
        h = jnp.maximum(h + b1, 0.0)
        # Layer 2 as an M=1 matmul: offloads the reduction onto the idle MXU
        # (vector-extended slot) instead of VPU multiply + cross-sublane sum.
        y = jnp.dot(w2, h, preferred_element_type=jnp.float32)     # (1, chunk)
        # Note: output could be packed as (8, tb/8) for fully sublane-dense
        # stores; only worth it if profiling shows store time (minor).
        o_ref[:, pl.ds(off, chunk)] = jax.nn.sigmoid(y + b2).astype(o_ref.dtype)
        return carry

    lax.fori_loop(0, n_chunks, body, 0, unroll=min(8, n_chunks))


_TB_DEFAULT = 128 * 1024  # lanes per grid step (~2-4 MiB of x): amortizes the
                          # ~0.35us fixed per-step overhead below ~15-20%.


def gating_network(x, w1, b1, w2, b2, *, tb=None, chunk=512,
                   compute_dtype=None, x_transposed=False):
    """sigmoid(relu(x @ w1 + b1) @ w2 + b2)  ==  GatingNetwork.forward.

    x : (B, in)  -- or (in, B) with x_transposed=True (preferred for large B:
        lets the producer emit the lane-major layout and removes the one
        wrapper transpose copy).
    w1: (in, 32)   b1: (32,)   w2: (32, 1)   b2: (1,)
    compute_dtype: dtype fed to the MXU for x/W1 (e.g. jnp.bfloat16 on
        v6e/v7x halves the dominant HBM traffic); accumulation stays f32.
    Returns (B, 1) in x.dtype.
    """
    if x_transposed:
        IN, B = x.shape
    else:
        B, IN = x.shape
    HID = w1.shape[1]
    LANE = 128

    if compute_dtype is None:
        compute_dtype = x.dtype
    out_dtype = x.dtype

    chunk = max(LANE, (int(chunk) // LANE) * LANE)

    # Batch tile: as large as the default allows, clamped so a small B maps to
    # a single tile, and capped to >= 2 tiles for large B so both v7x
    # TensorCores get work (no-op on single-TC v5e/v6e).
    if tb is None:
        tb = _TB_DEFAULT
    b_ceil = pl.cdiv(B, chunk) * chunk
    tb = min(int(tb), b_ceil)
    if b_ceil > 2 * chunk:
        tb = min(tb, pl.cdiv(b_ceil // 2, chunk) * chunk)
    tb = max(chunk, (tb // chunk) * chunk)

    # Ragged tail handled in-kernel by Pallas partial-block masking: no
    # jnp.pad copy of x.  Garbage lanes in the last tile are dropped on store.
    grid = (pl.cdiv(B, tb),)

    # Layout plumbing (wrapper side): batch -> lane axis.  Cast to the compute
    # dtype *before* transposing so the one unavoidable copy is half-size when
    # compute_dtype is bf16.
    x_t = x.astype(compute_dtype) if x_transposed else x.astype(compute_dtype).T
    w1t = w1.astype(compute_dtype).T                    # (HID, IN)
    b1c = b1.reshape(HID, 1).astype(jnp.float32)        # (HID, 1)
    w2r = w2.reshape(1, HID).astype(jnp.float32)        # (1, HID)
    b2s = b2.reshape(1, 1).astype(jnp.float32)          # SMEM scalar

    # VMEM budget: only the double-buffered x/out tiles matter (h lives
    # per-chunk in vregs).  Cap well under v7x's 64 MiB physical VMEM.
    x_bytes = IN * tb * jnp.dtype(compute_dtype).itemsize
    o_bytes = tb * jnp.dtype(out_dtype).itemsize
    vmem_limit = int(min(max(4 * (x_bytes + o_bytes), 32 << 20), 60 << 20))

    out_t = pl.pallas_call(
        functools.partial(gating_kernel, chunk=chunk),
        out_shape=jax.ShapeDtypeStruct((1, B), out_dtype),
        grid=grid,
        in_specs=[
            pl.BlockSpec((IN, tb), lambda i: (0, i)),          # stream x tiles
            pl.BlockSpec((HID, IN), lambda i: (0, 0)),         # resident weights
            pl.BlockSpec((HID, 1), lambda i: (0, 0)),
            pl.BlockSpec((1, HID), lambda i: (0, 0)),
            pl.BlockSpec(memory_space=pltpu.MemorySpace.SMEM),  # b2 scalar
        ],
        out_specs=pl.BlockSpec((1, tb), lambda i: (0, i)),     # lane-dense out
        compiler_params=pltpu.CompilerParams(
            dimension_semantics=("parallel",),   # v7x: shard batch grid on 2 TCs
            vmem_limit_bytes=vmem_limit,
        ),
    )(x_t, w1t, b1c, w2r, b2s)

    # (1, B) -> (B, 1) is a pure bitcast reshape of contiguous memory.
    return out_t.reshape(B, 1)


def init_params(num_classes=2, dtype=jnp.float32, key=None):
    """nn.Linear-style uniform(+/- 1/sqrt(fan_in)) init. W stored as [in, out]."""
    in1, hid, out = num_classes * 2, 32, 1
    if key is None:
        key = jax.random.PRNGKey(0)
    k1, k2, k3, k4 = jax.random.split(key, 4)
    bound1 = 1.0 / jnp.sqrt(in1)
    bound2 = 1.0 / jnp.sqrt(hid)
    w1 = jax.random.uniform(k1, (in1, hid), dtype, -bound1, bound1)
    b1 = jax.random.uniform(k2, (hid,), dtype, -bound1, bound1)
    w2 = jax.random.uniform(k3, (hid, out), dtype, -bound2, bound2)
    b2 = jax.random.uniform(k4, (out,), dtype, -bound2, bound2)
    return w1, b1, w2, b2


if __name__ == "__main__":
    num_classes = 2
    batch = 8

    root = jax.random.PRNGKey(0)
    k_params, k_x = jax.random.split(root)
    w1, b1, w2, b2 = init_params(num_classes, key=k_params)
    x = jax.random.normal(k_x, (batch, num_classes * 2), jnp.float32)

    # Plain-JAX reference.
    ref = jax.nn.sigmoid(jnp.maximum(x @ w1 + b1, 0.0) @ w2 + b2)

    # f32 path.
    out = jax.block_until_ready(gating_network(x, w1, b1, w2, b2))
    assert out.shape == (batch, 1)
    assert jnp.allclose(out, ref, atol=5e-3), float(jnp.max(jnp.abs(out - ref)))

    # bf16-fed MXU path (recommended on v6e/v7x: halves x HBM traffic).
    out_bf = jax.block_until_ready(
        gating_network(x, w1, b1, w2, b2, compute_dtype=jnp.bfloat16))
    assert jnp.allclose(out_bf, ref, atol=2e-2), float(jnp.max(jnp.abs(out_bf - ref)))

    print("KERNEL_OK")
</pallas_src>

<mosaic_0001>
module attributes {stable_mosaic.version = 11 : i64} {
  func.func @gating_kernel(%arg0: i32, %arg1: memref<4x512xf32, #tpu.memory_space<vmem>>, %arg2: memref<32x4xf32, #tpu.memory_space<vmem>>, %arg3: memref<32x1xf32, #tpu.memory_space<vmem>>, %arg4: memref<1x32xf32, #tpu.memory_space<vmem>>, %arg5: memref<1x1xf32, #tpu.memory_space<smem>>, %arg6: memref<1x512xf32, #tpu.memory_space<vmem>>) attributes {dimension_semantics = [#tpu.dimension_semantics<parallel>], iteration_bounds = array<i64: 1>, scalar_prefetch = 0 : i64, scratch_operands = 0 : i64, tpu.core_type = #tpu.core_type<tc>, window_params = [{transform_indices = @transform_0, window_bounds = array<i64: 4, 512>}, {pipeline_mode = #tpu.pipeline_mode<synchronous>, transform_indices = @transform_1, window_bounds = array<i64: 32, 4>}, {pipeline_mode = #tpu.pipeline_mode<synchronous>, transform_indices = @transform_2, window_bounds = array<i64: 32, 1>}, {pipeline_mode = #tpu.pipeline_mode<synchronous>, transform_indices = @transform_3, window_bounds = array<i64: 1, 32>}, {transform_indices = @transform_4, window_bounds = array<i64: 1, 1>}, {transform_indices = @transform_5, window_bounds = array<i64: 1, 512>}]} {
    %c0 = arith.constant 0 : index
    %c0_0 = arith.constant 0 : index
    %0 = vector.load %arg2[%c0, %c0_0] : memref<32x4xf32, #tpu.memory_space<vmem>>, vector<32x4xf32>
    %c0_1 = arith.constant 0 : index
    %c0_2 = arith.constant 0 : index
    %1 = vector.load %arg4[%c0_1, %c0_2] : memref<1x32xf32, #tpu.memory_space<vmem>>, vector<1x32xf32>
    %c0_3 = arith.constant 0 : index
    %c0_4 = arith.constant 0 : index
    %2 = vector.load %arg3[%c0_3, %c0_4] : memref<32x1xf32, #tpu.memory_space<vmem>>, vector<32x1xf32>
    %3 = vector.shape_cast %2 : vector<32x1xf32> to vector<32x1xf32>
    %4 = vector.broadcast %3 : vector<32x1xf32> to vector<32x512xf32>
    %c0_5 = arith.constant 0 : index
    %c0_6 = arith.constant 0 : index
    %5 = memref.load %arg5[%c0_5, %c0_6] : memref<1x1xf32, #tpu.memory_space<smem>>
    %c0_i32 = arith.constant 0 : i32
    %c512_i32 = arith.constant 512 : i32
    %6 = arith.muli %c0_i32, %c512_i32 : i32
    %7 = tpu.assume_multiple %6, 512 : i32
    %c0_7 = arith.constant 0 : index
    %8 = arith.index_cast %7 : i32 to index
    %9 = vector.load %arg1[%c0_7, %8] : memref<4x512xf32, #tpu.memory_space<vmem>>, vector<4x512xf32>
    %cst = arith.constant dense<0.000000e+00> : vector<32x512xf32>
    %10 = tpu.matmul %0, %9, %cst {dimension_numbers = #tpu.dot_dimension_numbers<[1], [0], [0], [1], [0, 0, 1, 1], [], []>} : vector<32x4xf32>, vector<4x512xf32>, vector<32x512xf32> -> vector<32x512xf32>
    %11 = arith.addf %10, %4 : vector<32x512xf32>
    %cst_8 = arith.constant 0.000000e+00 : f32
    %12 = vector.broadcast %cst_8 : f32 to vector<32x512xf32>
    %13 = arith.maximumf %11, %12 : vector<32x512xf32>
    %cst_9 = arith.constant dense<0.000000e+00> : vector<1x512xf32>
    %14 = tpu.matmul %1, %13, %cst_9 {dimension_numbers = #tpu.dot_dimension_numbers<[1], [0], [0], [1], [0, 0, 1, 1], [], []>} : vector<1x32xf32>, vector<32x512xf32>, vector<1x512xf32> -> vector<1x512xf32>
    %15 = vector.broadcast %5 : f32 to vector<1x512xf32>
    %16 = arith.addf %14, %15 : vector<1x512xf32>
    %17 = arith.negf %16 : vector<1x512xf32>
    %18 = math.exp %17 : vector<1x512xf32>
    %cst_10 = arith.constant 1.000000e+00 : f32
    %19 = vector.broadcast %cst_10 : f32 to vector<1x512xf32>
    %20 = arith.addf %19, %18 : vector<1x512xf32>
    %21 = arith.divf %19, %20 : vector<1x512xf32>
    %c0_11 = arith.constant 0 : index
    %22 = arith.index_cast %7 : i32 to index
    %23 = vector.load %arg6[%c0_11, %22] : memref<1x512xf32, #tpu.memory_space<vmem>>, vector<1x512xf32>
    tpu.vector_store %arg6[%c0_11, %22], %21 {strides = array<i32>} : memref<1x512xf32, #tpu.memory_space<vmem>>, vector<1x512xf32>,
    %c1_i32 = arith.constant 1 : i32
    return
  }
  func.func @transform_0(%arg0: i32) -> (i32, i32) {
    %c0_i32 = arith.constant 0 : i32
    %c0_i32_0 = arith.constant 0 : i32
    return %c0_i32, %arg0 : i32, i32
  }
  func.func @transform_1(%arg0: i32) -> (i32, i32) {
    %c0_i32 = arith.constant 0 : i32
    %c0_i32_0 = arith.constant 0 : i32
    %c0_i32_1 = arith.constant 0 : i32
    return %c0_i32, %c0_i32_0 : i32, i32
  }
  func.func @transform_2(%arg0: i32) -> (i32, i32) {
    %c0_i32 = arith.constant 0 : i32
    %c0_i32_0 = arith.constant 0 : i32
    %c0_i32_1 = arith.constant 0 : i32
    return %c0_i32, %c0_i32_0 : i32, i32
  }
  func.func @transform_3(%arg0: i32) -> (i32, i32) {
    %c0_i32 = arith.constant 0 : i32
    %c0_i32_0 = arith.constant 0 : i32
    %c0_i32_1 = arith.constant 0 : i32
    return %c0_i32, %c0_i32_0 : i32, i32
  }
  func.func @transform_4(%arg0: i32) -> (i32, i32) {
    %c0_i32 = arith.constant 0 : i32
    %c0_i32_0 = arith.constant 0 : i32
    %c0_i32_1 = arith.constant 0 : i32
    return %c0_i32, %c0_i32_0 : i32, i32
  }
  func.func @transform_5(%arg0: i32) -> (i32, i32) {
    %c0_i32 = arith.constant 0 : i32
    %c0_i32_0 = arith.constant 0 : i32
    return %c0_i32, %arg0 : i32, i32
  }
}

</mosaic_0001>

<llo_original>
// kernel: tpu_custom_call.1
$region0: #{tpu_custom_call.1}
  #allocation0 [shape = 'u32[]', space=smem, size = 0x4, offset = 0x4, fixed_abs, tag = 'smem constant byte address 0x4 - core index']
  #allocation1 [shape = 'u32[144,128]{1,0:T(1,128)}', space=vmem, size = 0x12000, scoped, tag = 'internal scratch']
  #allocation2 [shape = 'f32[1,1]{1,0:T(1,128)S(6)}', space=smem, size = 0x200, scoped, tag = 'scoped memory for tpu_custom_call.1']
  %s0 = inlined_call_operand.vmem [shape: f32[4,8], index: 0, kind: input, shape index: {}]
  %s1 = inlined_call_operand.vmem [shape: f32[32,4], index: 1, kind: input, shape index: {}]
  %s2 = inlined_call_operand.vmem [shape: f32[32,1], index: 2, kind: input, shape index: {}]
  %s3 = inlined_call_operand.vmem [shape: f32[1,32], index: 3, kind: input, shape index: {}]
  %s4 = inlined_call_operand.<no memory space> [shape: f32[1,1], index: 4, kind: input, shape index: {}]
  %s5 = inlined_call_operand.hbm [shape: f32[1,8], index: 5, kind: output, shape index: {}]
  %s6 = sld [smem:[#allocation0]]
  $region30: #{tpu_custom_call.1} parent=0
    _
  %s8 = ssub.s32 1, %s6
  %s9 = scalar_select 0, %s8, %s6
  %10 = sst [smem:[#allocation2]] %s4
  $region1: #{tpu_custom_call.1} parent=0
    #allocation3 [shape = 'u8[2048]{0}', space=vmem, size = 0x800, scoped, tag = 'output window, operand 0, single buffered']
    #allocation4 [shape = 's32[1]{0}', space=sflag, size = 0x4, scoped, tag = 'scoped memory for tpu_custom_call.1']
    %11 = vsyncpa [#allocation4], 0
    // Predicated region
    $region2: #{tpu_custom_call.1} parent=1 // pred_check
      _
    $region3: #{tpu_custom_call.1} parent=1 // pred_check_branch
      %13 = sbr.rel (0) target = $region5
    $region4: #{tpu_custom_call.1} parent=1 // pred_region
      _
    $region5: #{tpu_custom_call.1} parent=1 // pred_fallthru
      _
    // Predicated region
    $region6: #{tpu_custom_call.1} parent=1 // pred_check
      _
    $region7: #{tpu_custom_call.1} parent=1 // pred_check_branch
      %15 = sbr.rel (0) target = $region9
    $region8: #{tpu_custom_call.1} parent=1 // pred_region
      _
    $region9: #{tpu_custom_call.1} parent=1 // pred_fallthru
      _
    // Predicated region
    $region10: #{tpu_custom_call.1} parent=1 // pred_check
      _
    $region11: #{tpu_custom_call.1} parent=1 // pred_check_branch
      %17 = sbr.rel (0) target = $region13
    $region12: #{tpu_custom_call.1} parent=1 // pred_region
      _
    $region13: #{tpu_custom_call.1} parent=1 // pred_fallthru
      _
    // Predicated region
    $region14: #{tpu_custom_call.1} parent=1 // pred_check
      _
    $region15: #{tpu_custom_call.1} parent=1 // pred_check_branch
      %19 = sbr.rel (0) target = $region17
    $region16: #{tpu_custom_call.1} parent=1 // pred_region
      _
    $region17: #{tpu_custom_call.1} parent=1 // pred_fallthru
      _
    // Predicated region
    $region18: #{tpu_custom_call.1} parent=1 // pred_check
      _
    $region19: #{tpu_custom_call.1} parent=1 // pred_check_branch
      %21 = sbr.rel (0) target = $region21
    $region20: #{tpu_custom_call.1} parent=1 // pred_region
      _
    $region21: #{tpu_custom_call.1} parent=1 // pred_fallthru
      _
    %v22 = vld [vmem:[%s1] sm:$0xff]
    %v23 = vld [vmem:[%s1 + $0x8] sm:$0xff]
    %v24 = vld [vmem:[%s1 + $0x10] sm:$0xff]
    %v25 = vld [vmem:[%s1 + $0x18] sm:$0xff]
    %v26 = vld [vmem:[%s3] sm:$0x1]
    %v27 = vld [vmem:[%s2] sm:$0xff]
    %v28 = vld [vmem:[%s2 + $0x8] sm:$0xff]
    %v29 = vld [vmem:[%s2 + $0x10] sm:$0xff]
    %v30 = vld [vmem:[%s2 + $0x18] sm:$0xff]
    %32 = vset.pattern.permute.xlu0 0
    %33 = vperm.xlu0 %32, %v27
    %v34 = vpop.permute.xlu0 %33
    %37 = vset.pattern.permute.xlu0 0
    %38 = vperm.xlu0 %37, %v28
    %v39 = vpop.permute.xlu0 %38
    %42 = vset.pattern.permute.xlu0 0
    %43 = vperm.xlu0 %42, %v29
    %v44 = vpop.permute.xlu0 %43
    %47 = vset.pattern.permute.xlu0 0
    %48 = vperm.xlu0 %47, %v30
    %v49 = vpop.permute.xlu0 %48
    %s51 = sld [smem:[#allocation2]]
    %v52 = vld [vmem:[%s0] sm:$0xff]
    %v53 = vld [vmem:[%s0 + $0x8] sm:$0xff]
    %v56 = vcombine.high %v52, %v52
    %v57 = vcombine.high %v53, %v53
    %vm58 = vcmask 31744
    %v60 = vsel %vm58, %v22, 0
    %v63 = vsel %vm58, %v23, 0
    %v66 = vsel %vm58, %v24, 0
    %v69 = vsel %vm58, %v25, 0
    %vm71 = vcmask 1043456
    %v72 = vsel %vm71, %v52, 0
    %v74 = vsel %vm71, %v56, 0
    %v76 = vsel %vm71, %v53, 0
    %v78 = vsel %vm71, %v57, 0
    %80 = vmatprep.subr.mxu0 %v74
    %81 = vmatpush1.msra.mxu0 %v72
    %82 = vmatprep.subr.mxu0 0.0
    %83 = vmatpush1.msra.mxu0 0.0
    %84 = vmatprep.subr.mxu0 0.0
    %85 = vmatpush1.msra.mxu0 0.0
    %86 = vmatprep.subr.mxu0 0.0
    %87 = vmatpush1.msra.mxu0 0.0
    %88 = vmatprep.subr.mxu0 0.0
    %89 = vmatpush1.msra.mxu0 0.0
    %90 = vmatprep.subr.mxu0 0.0
    %91 = vmatpush1.msra.mxu0 0.0
    %92 = vmatprep.subr.mxu0 0.0
    %93 = vmatpush1.msra.mxu0 0.0
    %94 = vmatprep.subr.mxu0 0.0
    %95 = vmatpush1.msra.mxu0 0.0
    %96 = vmatprep.subr.mxu0 0.0
    %97 = vmatpush1.msra.mxu0 0.0
    %98 = vmatprep.subr.mxu0 0.0
    %99 = vmatpush1.msra.mxu0 0.0
    %100 = vmatprep.subr.mxu0 0.0
    %101 = vmatpush1.msra.mxu0 0.0
    %102 = vmatprep.subr.mxu0 0.0
    %103 = vmatpush1.msra.mxu0 0.0
    %104 = vmatprep.subr.mxu0 0.0
    %105 = vmatpush1.msra.mxu0 0.0
    %106 = vmatprep.subr.mxu0 0.0
    %107 = vmatpush1.msra.mxu0 0.0
    %108 = vmatprep.subr.mxu0 0.0
    %109 = vmatpush1.msra.mxu0 0.0
    %110 = vmatprep.subr.mxu0 0.0
    %111 = vmatpush1.msra.mxu0 0.0
    %112 = vmatprep.subr.mxu0 0.0
    %113 = vmatpush1.msra.mxu0 0.0
    %114 = vmatprep.subr.mxu0 0.0
    %115 = vmatpush1.msra.mxu0 0.0
    %116 = vmatprep.subr.mxu0 0.0
    %117 = vmatpush1.msra.mxu0 0.0
    %118 = vmatprep.subr.mxu0 0.0
    %119 = vmatpush1.msra.mxu0 0.0
    %120 = vmatprep.subr.mxu0 0.0
    %121 = vmatpush1.msra.mxu0 0.0
    %122 = vmatprep.subr.mxu0 0.0
    %123 = vmatpush1.msra.mxu0 0.0
    %124 = vmatprep.subr.mxu0 0.0
    %125 = vmatpush1.msra.mxu0 0.0
    %126 = vmatprep.subr.mxu0 0.0
    %127 = vmatpush1.msra.mxu0 0.0
    %128 = vmatprep.subr.mxu0 0.0
    %129 = vmatpush1.msra.mxu0 0.0
    %130 = vmatprep.subr.mxu0 0.0
    %131 = vmatpush1.msra.mxu0 0.0
    %132 = vmatprep.subr.mxu0 0.0
    %133 = vmatpush1.msra.mxu0 0.0
    %134 = vmatprep.subr.mxu0 0.0
    %135 = vmatpush1.msra.mxu0 0.0
    %136 = vmatprep.subr.mxu0 0.0
    %137 = vmatpush1.msra.mxu0 0.0
    %138 = vmatprep.subr.mxu0 0.0
    %139 = vmatpush1.msra.mxu0 0.0
    %140 = vmatprep.subr.mxu0 0.0
    %141 = vmatpush1.msra.mxu0 0.0
    %142 = vmatprep.subr.mxu0 0.0
    %143 = vmatpush1.msra.mxu0 0.0
    %144 = vmatprep.mubr.f32.mxu0 0.0
    %145 = vmatmul.mubr.f32.gmra.mrb[0].mxu0 %v60
    %v146 = vpop.f32.mrb[0].mxu0
    %v147 = vadd.f32 %v34, %v146
    %v148 = vpop.f32.mrb[0].mxu0
    %v149 = vadd.f32 %v34, %v148
    %150 = vmatprep.mubr.f32.mxu0 0.0
    %151 = vmatmul.mubr.f32.gmra.mrb[0].mxu0 %v63
    %v152 = vpop.f32.mrb[0].mxu0
    %v153 = vadd.f32 %v39, %v152
    %v154 = vpop.f32.mrb[0].mxu0
    %v155 = vadd.f32 %v39, %v154
    %156 = vmatprep.mubr.f32.mxu0 0.0
    %157 = vmatmul.mubr.f32.gmra.mrb[0].mxu0 %v66
    %v158 = vpop.f32.mrb[0].mxu0
    %v159 = vadd.f32 %v44, %v158
    %v160 = vpop.f32.mrb[0].mxu0
    %v161 = vadd.f32 %v44, %v160
    %162 = vmatprep.mubr.f32.mxu0 0.0
    %163 = vmatmul.mubr.f32.gmra.mrb[0].mxu0 %v69
    %v164 = vpop.f32.mrb[0].mxu0
    %v165 = vadd.f32 %v49, %v164
    %v166 = vpop.f32.mrb[0].mxu0
    %v167 = vadd.f32 %v49, %v166
    %168 = vdwg.mxu0
    %169 = vmatprep.subr.mxu0 %v78
    %170 = vmatpush1.msra.mxu0 %v76
    %171 = vmatprep.subr.mxu0 0.0
    %172 = vmatpush1.msra.mxu0 0.0
    %173 = vmatprep.subr.mxu0 0.0
    %174 = vmatpush1.msra.mxu0 0.0
    %175 = vmatprep.subr.mxu0 0.0
    %176 = vmatpush1.msra.mxu0 0.0
    %177 = vmatprep.subr.mxu0 0.0
    %178 = vmatpush1.msra.mxu0 0.0
    %179 = vmatprep.subr.mxu0 0.0
    %180 = vmatpush1.msra.mxu0 0.0
    %181 = vmatprep.subr.mxu0 0.0
    %182 = vmatpush1.msra.mxu0 0.0
    %183 = vmatprep.subr.mxu0 0.0
    %184 = vmatpush1.msra.mxu0 0.0
    %185 = vmatprep.subr.mxu0 0.0
    %186 = vmatpush1.msra.mxu0 0.0
    %187 = vmatprep.subr.mxu0 0.0
    %188 = vmatpush1.msra.mxu0 0.0
    %189 = vmatprep.subr.mxu0 0.0
    %190 = vmatpush1.msra.mxu0 0.0
    %191 = vmatprep.subr.mxu0 0.0
    %192 = vmatpush1.msra.mxu0 0.0
    %193 = vmatprep.subr.mxu0 0.0
    %194 = vmatpush1.msra.mxu0 0.0
    %195 = vmatprep.subr.mxu0 0.0
    %196 = vmatpush1.msra.mxu0 0.0
    %197 = vmatprep.subr.mxu0 0.0
    %198 = vmatpush1.msra.mxu0 0.0
    %199 = vmatprep.subr.mxu0 0.0
    %200 = vmatpush1.msra.mxu0 0.0
    %201 = vmatprep.subr.mxu0 0.0
    %202 = vmatpush1.msra.mxu0 0.0
    %203 = vmatprep.subr.mxu0 0.0
    %204 = vmatpush1.msra.mxu0 0.0
    %205 = vmatprep.subr.mxu0 0.0
    %206 = vmatpush1.msra.mxu0 0.0
    %207 = vmatprep.subr.mxu0 0.0
    %208 = vmatpush1.msra.mxu0 0.0
    %209 = vmatprep.subr.mxu0 0.0
    %210 = vmatpush1.msra.mxu0 0.0
    %211 = vmatprep.subr.mxu0 0.0
    %212 = vmatpush1.msra.mxu0 0.0
    %213 = vmatprep.subr.mxu0 0.0
    %214 = vmatpush1.msra.mxu0 0.0
    %215 = vmatprep.subr.mxu0 0.0
    %216 = vmatpush1.msra.mxu0 0.0
    %217 = vmatprep.subr.mxu0 0.0
    %218 = vmatpush1.msra.mxu0 0.0
    %219 = vmatprep.subr.mxu0 0.0
    %220 = vmatpush1.msra.mxu0 0.0
    %221 = vmatprep.subr.mxu0 0.0
    %222 = vmatpush1.msra.mxu0 0.0
    %223 = vmatprep.subr.mxu0 0.0
    %224 = vmatpush1.msra.mxu0 0.0
    %225 = vmatprep.subr.mxu0 0.0
    %226 = vmatpush1.msra.mxu0 0.0
    %227 = vmatprep.subr.mxu0 0.0
    %228 = vmatpush1.msra.mxu0 0.0
    %229 = vmatprep.subr.mxu0 0.0
    %230 = vmatpush1.msra.mxu0 0.0
    %231 = vmatprep.subr.mxu0 0.0
    %232 = vmatpush1.msra.mxu0 0.0
    %233 = vmatprep.mubr.f32.mxu0 0.0
    %234 = vmatmul.mubr.f32.gmra.mrb[0].mxu0 %v60
    %v235 = vpop.f32.mrb[0].mxu0
    %v236 = vadd.f32 %v34, %v235
    %v237 = vpop.f32.mrb[0].mxu0
    %v238 = vadd.f32 %v34, %v237
    %239 = vmatprep.mubr.f32.mxu0 0.0
    %240 = vmatmul.mubr.f32.gmra.mrb[0].mxu0 %v63
    %v241 = vpop.f32.mrb[0].mxu0
    %v242 = vadd.f32 %v39, %v241
    %v243 = vpop.f32.mrb[0].mxu0
    %v244 = vadd.f32 %v39, %v243
    %245 = vmatprep.mubr.f32.mxu0 0.0
    %246 = vmatmul.mubr.f32.gmra.mrb[0].mxu0 %v66
    %v247 = vpop.f32.mrb[0].mxu0
    %v248 = vadd.f32 %v44, %v247
    %v249 = vpop.f32.mrb[0].mxu0
    %v250 = vadd.f32 %v44, %v249
    %251 = vmatprep.mubr.f32.mxu0 0.0
    %252 = vmatmul.mubr.f32.gmra.mrb[0].mxu0 %v69
    %v253 = vpop.f32.mrb[0].mxu0
    %v254 = vadd.f32 %v49, %v253
    %v255 = vpop.f32.mrb[0].mxu0
    %v256 = vadd.f32 %v49, %v255
    %257 = vdwg.mxu0
    %v258 = vmax.f32 %v147, 0.0
    %v259 = vmax.f32 %v149, 0.0
    %v260 = vmax.f32 %v236, 0.0
    %v261 = vmax.f32 %v238, 0.0
    %v262 = vmax.f32 %v153, 0.0
    %v263 = vmax.f32 %v155, 0.0
    %v264 = vmax.f32 %v242, 0.0
    %v265 = vmax.f32 %v244, 0.0
    %v266 = vmax.f32 %v159, 0.0
    %v267 = vmax.f32 %v161, 0.0
    %v268 = vmax.f32 %v248, 0.0
    %v269 = vmax.f32 %v250, 0.0
    %v270 = vmax.f32 %v165, 0.0
    %v271 = vmax.f32 %v167, 0.0
    %v272 = vmax.f32 %v254, 0.0
    %v273 = vmax.f32 %v256, 0.0
    %v274 = vstv %s51
    %vm275 = vcmask 261120
    %v277 = vsel %vm275, %v26, 0
    %279 = vmatprep.subr.mxu0 %v259
    %280 = vmatpush1.msra.mxu0 %v258
    %281 = vmatprep.subr.mxu0 %v263
    %282 = vmatpush1.msra.mxu0 %v262
    %283 = vmatprep.subr.mxu0 %v267
    %284 = vmatpush1.msra.mxu0 %v266
    %285 = vmatprep.subr.mxu0 %v271
    %286 = vmatpush1.msra.mxu0 %v270
    %287 = vmatprep.subr.mxu0 0.0
    %288 = vmatpush1.msra.mxu0 0.0
    %289 = vmatprep.subr.mxu0 0.0
    %290 = vmatpush1.msra.mxu0 0.0
    %291 = vmatprep.subr.mxu0 0.0
    %292 = vmatpush1.msra.mxu0 0.0
    %293 = vmatprep.subr.mxu0 0.0
    %294 = vmatpush1.msra.mxu0 0.0
    %295 = vmatprep.subr.mxu0 0.0
    %296 = vmatpush1.msra.mxu0 0.0
    %297 = vmatprep.subr.mxu0 0.0
    %298 = vmatpush1.msra.mxu0 0.0
    %299 = vmatprep.subr.mxu0 0.0
    %300 = vmatpush1.msra.mxu0 0.0
    %301 = vmatprep.subr.mxu0 0.0
    %302 = vmatpush1.msra.mxu0 0.0
    %303 = vmatprep.subr.mxu0 0.0
    %304 = vmatpush1.msra.mxu0 0.0
    %305 = vmatprep.subr.mxu0 0.0
    %306 = vmatpush1.msra.mxu0 0.0
    %307 = vmatprep.subr.mxu0 0.0
    %308 = vmatpush1.msra.mxu0 0.0
    %309 = vmatprep.subr.mxu0 0.0
    %310 = vmatpush1.msra.mxu0 0.0
    %311 = vmatprep.subr.mxu0 0.0
    %312 = vmatpush1.msra.mxu0 0.0
    %313 = vmatprep.subr.mxu0 0.0
    %314 = vmatpush1.msra.mxu0 0.0
    %315 = vmatprep.subr.mxu0 0.0
    %316 = vmatpush1.msra.mxu0 0.0
    %317 = vmatprep.subr.mxu0 0.0
    %318 = vmatpush1.msra.mxu0 0.0
    %319 = vmatprep.subr.mxu0 0.0
    %320 = vmatpush1.msra.mxu0 0.0
    %321 = vmatprep.subr.mxu0 0.0
    %322 = vmatpush1.msra.mxu0 0.0
    %323 = vmatprep.subr.mxu0 0.0
    %324 = vmatpush1.msra.mxu0 0.0
    %325 = vmatprep.subr.mxu0 0.0
    %326 = vmatpush1.msra.mxu0 0.0
    %327 = vmatprep.subr.mxu0 0.0
    %328 = vmatpush1.msra.mxu0 0.0
    %329 = vmatprep.subr.mxu0 0.0
    %330 = vmatpush1.msra.mxu0 0.0
    %331 = vmatprep.subr.mxu0 0.0
    %332 = vmatpush1.msra.mxu0 0.0
    %333 = vmatprep.subr.mxu0 0.0
    %334 = vmatpush1.msra.mxu0 0.0
    %335 = vmatprep.subr.mxu0 0.0
    %336 = vmatpush1.msra.mxu0 0.0
    %337 = vmatprep.subr.mxu0 0.0
    %338 = vmatpush1.msra.mxu0 0.0
    %339 = vmatprep.subr.mxu0 0.0
    %340 = vmatpush1.msra.mxu0 0.0
    %341 = vmatprep.subr.mxu0 0.0
    %342 = vmatpush1.msra.mxu0 0.0
    %343 = vmatprep.mubr.f32.mxu0 0.0
    %344 = vmatmul.mubr.f32.gmra.mrb[0].mxu0 %v277
    %v345 = vpop.f32.mrb[0].mxu0
    %v346 = vadd.f32 %v274, %v345
    %v347 = vpop.f32.mrb[0].mxu0
    %v348 = vadd.f32 %v274, %v347
    %349 = vdwg.mxu0
    %350 = vmatprep.subr.mxu0 %v261
    %351 = vmatpush1.msra.mxu0 %v260
    %352 = vmatprep.subr.mxu0 %v265
    %353 = vmatpush1.msra.mxu0 %v264
    %354 = vmatprep.subr.mxu0 %v269
    %355 = vmatpush1.msra.mxu0 %v268
    %356 = vmatprep.subr.mxu0 %v273
    %357 = vmatpush1.msra.mxu0 %v272
    %358 = vmatprep.subr.mxu0 0.0
    %359 = vmatpush1.msra.mxu0 0.0
    %360 = vmatprep.subr.mxu0 0.0
    %361 = vmatpush1.msra.mxu0 0.0
    %362 = vmatprep.subr.mxu0 0.0
    %363 = vmatpush1.msra.mxu0 0.0
    %364 = vmatprep.subr.mxu0 0.0
    %365 = vmatpush1.msra.mxu0 0.0
    %366 = vmatprep.subr.mxu0 0.0
    %367 = vmatpush1.msra.mxu0 0.0
    %368 = vmatprep.subr.mxu0 0.0
    %369 = vmatpush1.msra.mxu0 0.0
    %370 = vmatprep.subr.mxu0 0.0
    %371 = vmatpush1.msra.mxu0 0.0
    %372 = vmatprep.subr.mxu0 0.0
    %373 = vmatpush1.msra.mxu0 0.0
    %374 = vmatprep.subr.mxu0 0.0
    %375 = vmatpush1.msra.mxu0 0.0
    %376 = vmatprep.subr.mxu0 0.0
    %377 = vmatpush1.msra.mxu0 0.0
    %378 = vmatprep.subr.mxu0 0.0
    %379 = vmatpush1.msra.mxu0 0.0
    %380 = vmatprep.subr.mxu0 0.0
    %381 = vmatpush1.msra.mxu0 0.0
    %382 = vmatprep.subr.mxu0 0.0
    %383 = vmatpush1.msra.mxu0 0.0
    %384 = vmatprep.subr.mxu0 0.0
    %385 = vmatpush1.msra.mxu0 0.0
    %386 = vmatprep.subr.mxu0 0.0
    %387 = vmatpush1.msra.mxu0 0.0
    %388 = vmatprep.subr.mxu0 0.0
    %389 = vmatpush1.msra.mxu0 0.0
    %390 = vmatprep.subr.mxu0 0.0
    %391 = vmatpush1.msra.mxu0 0.0
    %392 = vmatprep.subr.mxu0 0.0
    %393 = vmatpush1.msra.mxu0 0.0
    %394 = vmatprep.subr.mxu0 0.0
    %395 = vmatpush1.msra.mxu0 0.0
    %396 = vmatprep.subr.mxu0 0.0
    %397 = vmatpush1.msra.mxu0 0.0
    %398 = vmatprep.subr.mxu0 0.0
    %399 = vmatpush1.msra.mxu0 0.0
    %400 = vmatprep.subr.mxu0 0.0
    %401 = vmatpush1.msra.mxu0 0.0
    %402 = vmatprep.subr.mxu0 0.0
    %403 = vmatpush1.msra.mxu0 0.0
    %404 = vmatprep.subr.mxu0 0.0
    %405 = vmatpush1.msra.mxu0 0.0
    %406 = vmatprep.subr.mxu0 0.0
    %407 = vmatpush1.msra.mxu0 0.0
    %408 = vmatprep.subr.mxu0 0.0
    %409 = vmatpush1.msra.mxu0 0.0
    %410 = vmatprep.subr.mxu0 0.0
    %411 = vmatpush1.msra.mxu0 0.0
    %412 = vmatprep.subr.mxu0 0.0
    %413 = vmatpush1.msra.mxu0 0.0
    %414 = vmatprep.mubr.f32.mxu0 0.0
    %415 = vmatmul.mubr.f32.gmra.mrb[0].mxu0 %v277
    %v416 = vpop.f32.mrb[0].mxu0
    %v417 = vadd.f32 %v274, %v416
    %v418 = vpop.f32.mrb[0].mxu0
    %v419 = vadd.f32 %v274, %v418
    %420 = vdwg.mxu0
    %v421 = vxor.u32 %v346, 2147483648
    %v422 = vxor.u32 %v348, 2147483648
    %v423 = vxor.u32 %v417, 2147483648
    %v424 = vxor.u32 %v419, 2147483648
    %v425 = vmul.f32 %v421, 1.442695
    %v426 = vpow.pop %v425
    %v427 = vmul.f32 %v422, 1.442695
    %v428 = vpow.pop %v427
    %v429 = vmul.f32 %v423, 1.442695
    %v430 = vpow.pop %v429
    %v431 = vmul.f32 %v424, 1.442695
    %v432 = vpow.pop %v431
    %v433 = vadd.f32 %v426, 1.0
    %v434 = vadd.f32 %v428, 1.0
    %v435 = vadd.f32 %v430, 1.0
    %v436 = vadd.f32 %v432, 1.0
    %v437 = vrcp.pop %v433
    %v438 = vmul.f32 1.0, %v437
    %v439 = vrcp.pop %v434
    %v440 = vmul.f32 1.0, %v439
    %v441 = vrcp.pop %v435
    %v442 = vmul.f32 1.0, %v441
    %v443 = vrcp.pop %v436
    %v444 = vmul.f32 1.0, %v443
    %v449 = vcombine.low %v438, %v440
    %v450 = vcombine.low %v442, %v444
    %v452 = vunpack.c.l.s4 1966171168
    %v453 = vunpack.c.0.s8 %v452
    %v454 = vlaneseq
    %v455 = vshrl.u32 %v454, 7
    %v456 = vsub.s32 %v453, %v455
    %v457 = vrot.slane %v449, %v456
    %v459 = vunpack.c.l.s4 1966171168
    %v460 = vunpack.c.0.s8 %v459
    %v461 = vlaneseq
    %v462 = vshrl.u32 %v461, 7
    %v463 = vsub.s32 %v460, %v462
    %v464 = vrot.slane %v450, %v463
    %v465 = vcombine.low %v457, %v464
    %v467 = vunpack.c.l.s4 1966171168
    %v468 = vunpack.c.0.s8 %v467
    %v469 = vlaneseq
    %v470 = vshrl.u32 %v469, 7
    %v471 = vsub.s32 %v468, %v470
    %v472 = vrot.slane %v465, %v471
    %v474 = vlaneseq
    %vm475 = vcmp.ge.s32.totalorder %v474, 0
    %vm476 = vcmp.lt.s32.totalorder %v474, 512
    %vm477 = vmand %vm475, %vm476
    %478 = vst.msk [vmem:[#allocation3] sm:$0xf] %vm477, %v472
    // Predicated region
    $region22: #{tpu_custom_call.1} parent=1 // pred_check
      _
    $region23: #{tpu_custom_call.1} parent=1 // pred_check_branch
      %480 = sbr.rel (0) target = $region25
    $region24: #{tpu_custom_call.1} parent=1 // pred_region
      %s482 = ssub.s32 64, 16
      %483 = vsyncadd [#allocation4], %s482
      %s485 = sshll.u32 [#allocation3], 4
      %s486 = int_to_ptr.vmem [resolvable:$true] %s485
      %488 = dma.vmem_to_hbm [thread:$0]  %s486, 16, %s5, [#allocation4]
    $region25: #{tpu_custom_call.1} parent=1 // pred_fallthru
      _
    // Predicated region
    $region26: #{tpu_custom_call.1} parent=1 // pred_check
      _
    $region27: #{tpu_custom_call.1} parent=1 // pred_check_branch
      %490 = sbr.rel (0) target = $region29
    $region28: #{tpu_custom_call.1} parent=1 // pred_region
      %491 = dma.done [#allocation4], 64
    $region29: #{tpu_custom_call.1} parent=1 // pred_fallthru
      _
    %492 = vsyncpa [#allocation4], 1

</llo_original>
